<compile_context>
chip_gen: v5e
topology: v5e:2x2
jax: 0.10.0
libtpu: 0.0.40
codegen_flags: <defaults>
</compile_context>

<pallas_src>
import jax
import jax.numpy as jnp
from jax import lax
from jax.experimental import pallas as pl
from jax.experimental.pallas import tpu as pltpu


def _gumbel_st_kernel(temp_ref, logits_ref, u_ref, out_ref):
    # Hoisted scalar reciprocal: one divide total instead of one per element.
    inv_t = 1.0 / temp_ref[0]

    # Gumbel noise from uniform U in [0, 1): g = -log(-log(U + eps) + eps).
    eps = 1e-20
    u = u_ref[...]
    g = -jnp.log(-jnp.log(u + eps) + eps)

    # Noisy, temperature-scaled logits (f32 compute regardless of input dtype).
    y = (logits_ref[...].astype(jnp.float32) + g) * inv_t

    # Straight-through forward value == one_hot(argmax(y)).  softmax is
    # strictly monotone, so argmax(softmax(y)) == argmax(y); exp/sum/reciprocal
    # are skipped entirely.  Ties resolve to the first max index (torch.max).
    n_class = y.shape[-1]
    col = lax.broadcasted_iota(jnp.int32, y.shape, 1)
    mx = jnp.max(y, axis=-1, keepdims=True)
    first_idx = jnp.min(
        jnp.where(y == mx, col, jnp.int32(n_class)), axis=-1, keepdims=True
    )
    out_ref[...] = (col == first_idx).astype(out_ref.dtype)


def _round_up(x, k):
    return (x + k - 1) // k * k


def gumbel_softmax(logits, temperature, key, block_rows=4096):
    """Straight-through Gumbel-Softmax forward.

    logits: [..., n_class] (any float dtype); returns a one-hot tensor of the
    same shape and dtype.  `key` is a jax.random key used for the Gumbel noise.
    """
    orig_shape = logits.shape
    n_class = orig_shape[-1]
    m = 1
    for d in orig_shape[:-1]:
        m *= d

    # Row tile: multiple of 8 sublanes, capped by the requested block size.
    tm = min(_round_up(m, 8), _round_up(block_rows, 8))
    m_pad = _round_up(m, tm)

    logits2d = logits.reshape(m, n_class)
    if m_pad != m:
        logits2d = jnp.concatenate(
            [logits2d, jnp.zeros((m_pad - m, n_class), logits2d.dtype)], axis=0
        )

    # Uniform noise per logical row (wrapper-side; see TODO at top of file).
    u = jax.random.uniform(key, (m_pad, n_class), dtype=jnp.float32)
    temp_arr = jnp.asarray([temperature], dtype=jnp.float32)

    grid = (m_pad // tm,)
    out2d = pl.pallas_call(
        _gumbel_st_kernel,
        out_shape=jax.ShapeDtypeStruct((m_pad, n_class), logits.dtype),
        grid=grid,
        in_specs=[
            pl.BlockSpec(memory_space=pltpu.MemorySpace.SMEM),   # temperature
            pl.BlockSpec((tm, n_class), lambda i: (i, 0)),       # logits tile
            pl.BlockSpec((tm, n_class), lambda i: (i, 0)),       # uniform tile
        ],
        out_specs=pl.BlockSpec((tm, n_class), lambda i: (i, 0)),
        compiler_params=pltpu.CompilerParams(
            dimension_semantics=("parallel",),
        ),
    )(temp_arr, logits2d, u)

    return out2d[:m].reshape(orig_shape)


if __name__ == "__main__":
    key = jax.random.PRNGKey(0)
    logits_key, noise_key = jax.random.split(key)

    # logits: [batch=2, seq=8, n_class=32]
    logits = jax.random.normal(logits_key, (2, 8, 32), dtype=jnp.float32)
    temperature = 0.5

    out = gumbel_softmax(logits, temperature, noise_key)
    out = jax.block_until_ready(out)

    # Sanity checks: shape/dtype preserved, every row is a valid one-hot vector
    # (the forward value of the straight-through estimator).
    assert out.shape == logits.shape
    assert out.dtype == logits.dtype
    assert bool(jnp.all(jnp.isfinite(out)))
    assert bool(jnp.all((out == 0.0) | (out == 1.0)))
    assert bool(jnp.all(jnp.sum(out, axis=-1) == 1.0))
    assert bool(jnp.all(jnp.sum(out == 1.0, axis=-1) == 1))

    print("KERNEL_OK")
</pallas_src>

<mosaic_0001>
module attributes {stable_mosaic.version = 11 : i64} {
  func.func @_gumbel_st_kernel(%arg0: i32, %arg1: memref<1xf32, #tpu.memory_space<smem>>, %arg2: memref<16x32xf32, #tpu.memory_space<vmem>>, %arg3: memref<16x32xf32, #tpu.memory_space<vmem>>, %arg4: memref<16x32xf32, #tpu.memory_space<vmem>>) attributes {dimension_semantics = [#tpu.dimension_semantics<parallel>], iteration_bounds = array<i64: 1>, scalar_prefetch = 0 : i64, scratch_operands = 0 : i64, tpu.core_type = #tpu.core_type<tc>, window_params = [{transform_indices = @transform_0, window_bounds = array<i64: 1>}, {transform_indices = @transform_1, window_bounds = array<i64: 16, 32>}, {transform_indices = @transform_2, window_bounds = array<i64: 16, 32>}, {transform_indices = @transform_3, window_bounds = array<i64: 16, 32>}]} {
    %c0 = arith.constant 0 : index
    %0 = memref.load %arg1[%c0] : memref<1xf32, #tpu.memory_space<smem>>
    %cst = arith.constant 1.000000e+00 : f32
    %1 = arith.divf %cst, %0 : f32
    %c0_0 = arith.constant 0 : index
    %c0_1 = arith.constant 0 : index
    %2 = vector.load %arg3[%c0_0, %c0_1] : memref<16x32xf32, #tpu.memory_space<vmem>>, vector<16x32xf32>
    %cst_2 = arith.constant 9.99999968E-21 : f32
    %3 = vector.broadcast %cst_2 : f32 to vector<16x32xf32>
    %4 = arith.addf %2, %3 : vector<16x32xf32>
    %5 = math.log %4 : vector<16x32xf32>
    %cst_3 = arith.constant 0.000000e+00 : f32
    %6 = vector.broadcast %cst_3 : f32 to vector<16x32xf32>
    %7 = arith.subf %6, %5 : vector<16x32xf32>
    %cst_4 = arith.constant 9.99999968E-21 : f32
    %8 = vector.broadcast %cst_4 : f32 to vector<16x32xf32>
    %9 = arith.addf %7, %8 : vector<16x32xf32>
    %10 = math.log %9 : vector<16x32xf32>
    %cst_5 = arith.constant 0.000000e+00 : f32
    %11 = vector.broadcast %cst_5 : f32 to vector<16x32xf32>
    %12 = arith.subf %11, %10 : vector<16x32xf32>
    %c0_6 = arith.constant 0 : index
    %c0_7 = arith.constant 0 : index
    %13 = vector.load %arg2[%c0_6, %c0_7] : memref<16x32xf32, #tpu.memory_space<vmem>>, vector<16x32xf32>
    %14 = arith.addf %13, %12 : vector<16x32xf32>
    %15 = vector.broadcast %1 : f32 to vector<16x32xf32>
    %16 = arith.mulf %14, %15 : vector<16x32xf32>
    %17 = tpu.iota {dimensions = array<i32: 1>} : vector<16x32xi32>
    %cst_8 = arith.constant dense<0xFF800000> : vector<16xf32>
    %18 = vector.multi_reduction <maximumf>, %16, %cst_8 [1] : vector<16x32xf32> to vector<16xf32>
    %19 = vector.shape_cast %18 : vector<16xf32> to vector<16x1xf32>
    %20 = vector.broadcast %19 : vector<16x1xf32> to vector<16x32xf32>
    %21 = arith.cmpf oeq, %16, %20 : vector<16x32xf32>
    %c32_i32 = arith.constant 32 : i32
    %22 = vector.broadcast %c32_i32 : i32 to vector<16x32xi32>
    %23 = arith.select %21, %17, %22 : vector<16x32xi1>, vector<16x32xi32>
    %cst_9 = arith.constant dense<2147483647> : vector<16xi32>
    %24 = vector.multi_reduction <minsi>, %23, %cst_9 [1] : vector<16x32xi32> to vector<16xi32>
    %25 = vector.shape_cast %24 : vector<16xi32> to vector<16x1xi32>
    %26 = vector.broadcast %25 : vector<16x1xi32> to vector<16x32xi32>
    %27 = arith.cmpi eq, %17, %26 : vector<16x32xi32>
    %28 = arith.extui %27 : vector<16x32xi1> to vector<16x32xi32>
    %29 = arith.sitofp %28 : vector<16x32xi32> to vector<16x32xf32>
    %c0_10 = arith.constant 0 : index
    %c0_11 = arith.constant 0 : index
    %30 = vector.load %arg4[%c0_10, %c0_11] : memref<16x32xf32, #tpu.memory_space<vmem>>, vector<16x32xf32>
    tpu.vector_store %arg4[%c0_10, %c0_11], %29 {strides = array<i32>} : memref<16x32xf32, #tpu.memory_space<vmem>>, vector<16x32xf32>,
    return
  }
  func.func @transform_0(%arg0: i32) -> i32 {
    %c0_i32 = arith.constant 0 : i32
    %c0_i32_0 = arith.constant 0 : i32
    return %c0_i32 : i32
  }
  func.func @transform_1(%arg0: i32) -> (i32, i32) {
    %c0_i32 = arith.constant 0 : i32
    %c0_i32_0 = arith.constant 0 : i32
    return %arg0, %c0_i32 : i32, i32
  }
  func.func @transform_2(%arg0: i32) -> (i32, i32) {
    %c0_i32 = arith.constant 0 : i32
    %c0_i32_0 = arith.constant 0 : i32
    return %arg0, %c0_i32 : i32, i32
  }
  func.func @transform_3(%arg0: i32) -> (i32, i32) {
    %c0_i32 = arith.constant 0 : i32
    %c0_i32_0 = arith.constant 0 : i32
    return %arg0, %c0_i32 : i32, i32
  }
}

</mosaic_0001>

<llo_original>
// kernel: tpu_custom_call.1
$region0: #{tpu_custom_call.1}
  #allocation0 [shape = 'u32[]', space=smem, size = 0x4, offset = 0x4, fixed_abs, tag = 'smem constant byte address 0x4 - core index']
  #allocation1 [shape = 'u32[72,128]{1,0:T(1,128)}', space=vmem, size = 0x9000, scoped, tag = 'internal scratch']
  #allocation2 [shape = 'f32[1]{0:T(128)S(6)}', space=smem, size = 0x200, scoped, tag = 'scoped memory for tpu_custom_call.1']
  %s0 = inlined_call_operand.<no memory space> [shape: f32[1], index: 0, kind: input, shape index: {}]
  %s1 = inlined_call_operand.hbm [shape: f32[16,32], index: 1, kind: input, shape index: {}]
  %s2 = inlined_call_operand.hbm [shape: f32[16,32], index: 2, kind: input, shape index: {}]
  %s3 = inlined_call_operand.hbm [shape: f32[16,32], index: 3, kind: output, shape index: {}]
  %s4 = sld [smem:[#allocation0]]
  $region30: #{tpu_custom_call.1} parent=0
    _
  %s6 = ssub.s32 1, %s4
  %s7 = scalar_select 0, %s6, %s4
  %8 = sst [smem:[#allocation2]] %s0
  $region1: #{tpu_custom_call.1} parent=0
    #allocation3 [shape = 'u8[8192]{0}', space=vmem, size = 0x2000, scoped, tag = 'input window, operand 1, single buffered']
    #allocation4 [shape = 's32[1]{0}', space=sflag, size = 0x4, scoped, tag = 'scoped memory for tpu_custom_call.1']
    #allocation5 [shape = 's32[1]{0}', space=sflag, size = 0x4, scoped, tag = 'scoped memory for tpu_custom_call.1']
    #allocation6 [shape = 'u8[8192]{0}', space=vmem, size = 0x2000, scoped, tag = 'input window, operand 2, single buffered']
    #allocation7 [shape = 's32[1]{0}', space=sflag, size = 0x4, scoped, tag = 'scoped memory for tpu_custom_call.1']
    #allocation8 [shape = 'u8[8192]{0}', space=vmem, size = 0x2000, scoped, tag = 'output window, operand 0, single buffered']
    %9 = vsyncpa [#allocation4], 0
    %10 = vsyncpa [#allocation7], 0
    %11 = vsyncpa [#allocation5], 0
    // Predicated region
    $region2: #{tpu_custom_call.1} parent=1 // pred_check
      _
    $region3: #{tpu_custom_call.1} parent=1 // pred_check_branch
      %13 = sbr.rel (0) target = $region5
    $region4: #{tpu_custom_call.1} parent=1 // pred_region
      _
    $region5: #{tpu_custom_call.1} parent=1 // pred_fallthru
      _
    // Predicated region
    $region6: #{tpu_custom_call.1} parent=1 // pred_check
      _
    $region7: #{tpu_custom_call.1} parent=1 // pred_check_branch
      %15 = sbr.rel (0) target = $region9
    $region8: #{tpu_custom_call.1} parent=1 // pred_region
      %17 = vsyncadd [#allocation4], 0
      %s18 = sshll.u32 %s1, 4
      %s19 = int_to_ptr.hbm [resolvable:$true] %s18
      %s20 = sshll.u32 [#allocation3], 4
      %s21 = int_to_ptr.vmem [resolvable:$true] %s20
      %26 = dma.hbm_to_vmem [thread:$0]  %s19, 256, %s21, [#allocation4], 128, 128, 8
    $region9: #{tpu_custom_call.1} parent=1 // pred_fallthru
      _
    // Predicated region
    $region10: #{tpu_custom_call.1} parent=1 // pred_check
      _
    $region11: #{tpu_custom_call.1} parent=1 // pred_check_branch
      %28 = sbr.rel (0) target = $region13
    $region12: #{tpu_custom_call.1} parent=1 // pred_region
      %30 = vsyncadd [#allocation7], 0
      %s31 = sshll.u32 %s2, 4
      %s32 = int_to_ptr.hbm [resolvable:$true] %s31
      %s33 = sshll.u32 [#allocation6], 4
      %s34 = int_to_ptr.vmem [resolvable:$true] %s33
      %39 = dma.hbm_to_vmem [thread:$0]  %s32, 256, %s34, [#allocation7], 128, 128, 8
    $region13: #{tpu_custom_call.1} parent=1 // pred_fallthru
      _
    // Predicated region
    $region14: #{tpu_custom_call.1} parent=1 // pred_check
      _
    $region15: #{tpu_custom_call.1} parent=1 // pred_check_branch
      %41 = sbr.rel (0) target = $region17
    $region16: #{tpu_custom_call.1} parent=1 // pred_region
      %43 = dma.done [#allocation4], 256
    $region17: #{tpu_custom_call.1} parent=1 // pred_fallthru
      _
    // Predicated region
    $region18: #{tpu_custom_call.1} parent=1 // pred_check
      _
    $region19: #{tpu_custom_call.1} parent=1 // pred_check_branch
      %45 = sbr.rel (0) target = $region21
    $region20: #{tpu_custom_call.1} parent=1 // pred_region
      %47 = dma.done [#allocation7], 256
    $region21: #{tpu_custom_call.1} parent=1 // pred_fallthru
      _
    %s48 = sld [smem:[#allocation2]]
    %v49 = vstv %s48
    %v50 = vrcp.pop %v49
    %v51 = vmul.f32 %v49, %v50
    %v52 = vsub.f32 1.0, %v51
    %v53 = vmul.f32 %v50, %v52
    %v54 = vadd.f32 %v50, %v53
    %vm55 = vweird.f32 %v49
    %vm56 = vweird.f32 %v50
    %vm57 = vmor %vm55, %vm56
    %v58 = vsel %vm57, %v50, %v54
    %v59 = vand.u32 2147483647, %v49
    %vm60 = vcmp.eq.f32.partialorder %v59, 8.507059e+37
    %v61 = vand.u32 %v49, 2147483648
    %v62 = vor.u32 1.1754944e-38, %v61
    %v63 = vsel %vm60, %v62, %v58
    %s64 = vtos %v63
    %v65 = vld [vmem:[#allocation6] sm:$0xff]
    %v66 = vld [vmem:[#allocation6 + $0x8] sm:$0xff]
    %v67 = vadd.f32 %v65, 1e-20
    %v68 = vadd.f32 %v66, 1e-20
    %v69 = vlog2.pop %v67
    %v70 = vmul.f32 %v69, 0.6931472
    %v71 = vlog2.pop %v68
    %v72 = vmul.f32 %v71, 0.6931472
    %v73 = vsub.f32 0.0, %v70
    %v74 = vsub.f32 0.0, %v72
    %v75 = vadd.f32 %v73, 1e-20
    %v76 = vadd.f32 %v74, 1e-20
    %v77 = vlog2.pop %v75
    %v78 = vmul.f32 %v77, 0.6931472
    %v79 = vlog2.pop %v76
    %v80 = vmul.f32 %v79, 0.6931472
    %v81 = vsub.f32 0.0, %v78
    %v82 = vsub.f32 0.0, %v80
    %v83 = vld [vmem:[#allocation3] sm:$0xff]
    %v84 = vld [vmem:[#allocation3 + $0x8] sm:$0xff]
    %v85 = vadd.f32 %v83, %v81
    %v86 = vadd.f32 %v84, %v82
    %v87 = vstv %s64
    %v88 = vmul.f32 %v85, %v87
    %v89 = vmul.f32 %v86, %v87
    %v90 = vlaneseq
    %v91 = vand.u32 %v90, 127
    %vm92 = vcmask 261120
    %v93 = vsel %vm92, %v88, -inf
    %94 = vmax.xlane.f32.xlu0 %v93
    %v95 = vpop.xlane.xlu0 %94
    %v96 = vsel %vm92, %v89, -inf
    %97 = vmax.xlane.f32.xlu0 %v96
    %v98 = vpop.xlane.xlu0 %97
    %vm99 = vcmp.eq.f32.partialorder %v88, %v95
    %vm100 = vcmp.eq.f32.partialorder %v89, %v98
    %v101 = vsel %vm99, %v91, 32
    %v102 = vsel %vm100, %v91, 32
    %v103 = vsel %vm92, %v101, 2147483647
    %v104 = vand.u32 %v103, 65535
    %v105 = vshra.s32 %v103, 16
    %v106 = vcvt.s32.f32 %v104
    %v107 = vcvt.s32.f32 %v105
    %108 = vmin.xlane.f32.xlu0 %v107
    %v109 = vpop.xlane.xlu0 %108
    %vm110 = vcmp.eq.f32.partialorder %v107, %v109
    %v111 = vsel %vm110, %v106, inf
    %112 = vmin.xlane.f32.xlu0 %v111
    %v113 = vpop.xlane.xlu0 %112
    %v114 = vcvt.f32.s32 %v113
    %v115 = vcvt.f32.s32 %v109
    %v116 = vshll.u32 %v115, 16
    %v117 = vadd.s32 %v116, %v114
    %v118 = vsel %vm92, %v102, 2147483647
    %v119 = vand.u32 %v118, 65535
    %v120 = vshra.s32 %v118, 16
    %v121 = vcvt.s32.f32 %v119
    %v122 = vcvt.s32.f32 %v120
    %123 = vmin.xlane.f32.xlu0 %v122
    %v124 = vpop.xlane.xlu0 %123
    %vm125 = vcmp.eq.f32.partialorder %v122, %v124
    %v126 = vsel %vm125, %v121, inf
    %127 = vmin.xlane.f32.xlu0 %v126
    %v128 = vpop.xlane.xlu0 %127
    %v129 = vcvt.f32.s32 %v128
    %v130 = vcvt.f32.s32 %v124
    %v131 = vshll.u32 %v130, 16
    %v132 = vadd.s32 %v131, %v129
    %vm133 = vcmp.eq.s32.totalorder %v91, %v117
    %vm134 = vcmp.eq.s32.totalorder %v91, %v132
    %v135 = vsel %vm133, 1, 0
    %v136 = vsel %vm134, 1, 0
    %v137 = vcvt.s32.f32 %v135
    %v138 = vcvt.s32.f32 %v136
    %139 = vst.msk [vmem:[#allocation8] sm:$0xff] %vm92, %v137
    %140 = vst.msk [vmem:[#allocation8 + $0x8] sm:$0xff] %vm92, %v138
    // Predicated region
    $region22: #{tpu_custom_call.1} parent=1 // pred_check
      _
    $region23: #{tpu_custom_call.1} parent=1 // pred_check_branch
      %142 = sbr.rel (0) target = $region25
    $region24: #{tpu_custom_call.1} parent=1 // pred_region
      %144 = vsyncadd [#allocation5], 0
      %s145 = sshll.u32 [#allocation8], 4
      %s146 = int_to_ptr.vmem [resolvable:$true] %s145
      %s147 = sshll.u32 %s3, 4
      %s148 = int_to_ptr.hbm [resolvable:$true] %s147
      %153 = dma.vmem_to_hbm [thread:$0]  %s146, 256, %s148, [#allocation5], 128, 128, 8
    $region25: #{tpu_custom_call.1} parent=1 // pred_fallthru
      _
    // Predicated region
    $region26: #{tpu_custom_call.1} parent=1 // pred_check
      _
    $region27: #{tpu_custom_call.1} parent=1 // pred_check_branch
      %155 = sbr.rel (0) target = $region29
    $region28: #{tpu_custom_call.1} parent=1 // pred_region
      %157 = dma.done [#allocation5], 256
    $region29: #{tpu_custom_call.1} parent=1 // pred_fallthru
      _
    %158 = vsyncpa [#allocation4], 1
    %159 = vsyncpa [#allocation7], 1
    %160 = vsyncpa [#allocation5], 1

</llo_original>
